<compile_context>
chip_gen: v7x
topology: tpu7x:2x2x1
jax: 0.10.0
libtpu: 0.0.40
codegen_flags: <defaults>
</compile_context>

<pallas_src>
import math

import jax
import jax.numpy as jnp
from jax.experimental import pallas as pl
from jax.experimental.pallas import tpu as pltpu


_TARGET_BLOCK_BYTES = 4 * 1024 * 1024  # ~4 MiB per x block (v6e/v7x roofline sweet spot)


def make_positional_encoding(d_model: int, max_seq_length: int, dtype=jnp.float32) -> jnp.ndarray:
    """Deterministic sinusoidal PE buffer, shape (1, max_seq_length, d_model)."""
    position = jnp.arange(0, max_seq_length, dtype=jnp.float32)[:, None]            # (L, 1)
    div_term = jnp.exp(
        jnp.arange(0, d_model, 2, dtype=jnp.float32) * -(math.log(10000.0) / d_model)
    )                                                                                # (ceil(D/2),)
    angles = position * div_term                                                     # (L, ceil(D/2))
    pe = jnp.zeros((max_seq_length, d_model), dtype=jnp.float32)
    pe = pe.at[:, 0::2].set(jnp.sin(angles))
    pe = pe.at[:, 1::2].set(jnp.cos(angles)[:, : d_model // 2])  # guard odd d_model
    return pe[None, :, :].astype(dtype)                                             # (1, L, D)


def _add_pe_kernel(x_ref, pe_ref, o_ref):
    # pe block is either (fold, col_tile) == x block rows, or (1, col_tile) and
    # broadcasts over the row tile.  Compute in f32 (VPU casts are free in a
    # mem-bound kernel), cast to the output dtype at the end.
    o_ref[...] = (
        x_ref[...].astype(jnp.float32) + pe_ref[...].astype(jnp.float32)
    ).astype(o_ref.dtype)


def _largest_dividing_tile(dim: int, base: int, budget: int) -> int:
    """Largest multiple of `base` that divides `dim` (requires base | dim) and is
    <= max(budget, base)."""
    t = min(dim, max(base, (budget // base) * base))
    while dim % t:
        t -= base
    return t


def transformer_positional_encoding(x: jnp.ndarray, pe: jnp.ndarray) -> jnp.ndarray:
    """x: (B, S, D); pe: (1, max_seq_length, D).  Returns x + pe[:, :S] in x.dtype."""
    B, S, D = x.shape
    assert pe.shape[-1] == D and pe.shape[-2] >= S, "pe buffer too small for input"
    SD = S * D
    itemsize = jnp.dtype(x.dtype).itemsize

    # PE slice in the activation dtype.  Under jit with a constant pe buffer this
    # slice / reshape / cast constant-folds (no per-call HBM work).
    pe_row = pe[0, :S, :]
    if pe_row.dtype != x.dtype:
        pe_row = pe_row.astype(x.dtype)

    # ---- Lane/sublane-dense 2D view (R, C) of x; PE view is (fold, C) ----------
    # Fold small batches into the sublane dim so vregs are not mostly empty.
    if B < 8 and B % 8 != 0 and SD % (8 * 128) == 0:
        fold = 8
    else:
        fold = 1
    R, C = B * fold, SD // fold
    x2 = x.reshape(R, C)
    pe2 = pe_row.reshape(fold, C)

    # ---- Column tile: multiple of 128 (or full extent), sized for ~4 MiB blocks --
    col_budget = max(128, (_TARGET_BLOCK_BYTES // (8 * itemsize) // 128) * 128)
    if C % 128 == 0:
        col_tile = _largest_dividing_tile(C, 128, col_budget)
    elif C <= col_budget:
        col_tile = C                  # full-extent block: exempt from the (8,128) rule
    else:
        col_tile = col_budget         # 128-aligned block; Pallas masks the edge tile

    # ---- Row tile: multiple of 8 (or full extent); equals `fold` when folded ----
    if fold > 1:
        row_tile = fold               # (8, col_tile) blocks; pe block == x block rows
    elif R < 8:
        row_tile = R                  # full-extent block: exempt from the (8,128) rule
    else:
        row_budget = max(8, _TARGET_BLOCK_BYTES // max(1, col_tile * itemsize))
        if R % 8 == 0:
            row_tile = _largest_dividing_tile(R, 8, row_budget)
        else:
            row_tile = max(8, min((row_budget // 8) * 8, (R // 8) * 8))  # masked edge

    nc = pl.cdiv(C, col_tile)
    nr = pl.cdiv(R, row_tile)

    # ---- v7x: guarantee >= 2 grid steps so both TensorCores get work ------------
    if nc * nr < 2 and col_tile >= 256:
        col_tile = max(128, ((col_tile // 2) // 128) * 128)
        nc = pl.cdiv(C, col_tile)
    if nc * nr < 2 and fold == 1 and row_tile >= 16:
        row_tile = max(8, ((row_tile // 2) // 8) * 8)
        nr = pl.cdiv(R, row_tile)

    cost = pl.CostEstimate(
        flops=R * C,
        transcendentals=0,
        # x read + out write + pe read exactly once (it stays VMEM-resident).
        bytes_accessed=2 * R * C * itemsize + fold * C * itemsize,
    )

    out2 = pl.pallas_call(
        _add_pe_kernel,
        out_shape=jax.ShapeDtypeStruct((R, C), x.dtype),
        grid_spec=pl.GridSpec(
            # Column axis OUTER, row axis INNER: the pe block index (0, j) is
            # unchanged across the inner row loop -> no per-step pe re-DMA.
            grid=(nc, nr),
            in_specs=[
                pl.BlockSpec((row_tile, col_tile), lambda j, i: (i, j)),
                pl.BlockSpec((fold, col_tile), lambda j, i: (0, j)),
            ],
            out_specs=pl.BlockSpec((row_tile, col_tile), lambda j, i: (i, j)),
        ),
        compiler_params=pltpu.CompilerParams(
            dimension_semantics=("parallel", "parallel"),
            vmem_limit_bytes=48 * 1024 * 1024,
        ),
        cost_estimate=cost,
        # Reuse x's HBM buffer for the output when x is dead after this op
        # (typical fused-transformer case); XLA copies defensively otherwise.
        input_output_aliases={0: 0},
    )(x2, pe2)

    return out2.reshape(B, S, D)


if __name__ == "__main__":
    # Module hyper-params (deterministic "weights": the sinusoidal buffer).
    d_model = 32
    max_seq_length = 16

    # Small example input: batch=2, seq=8, hidden=d_model=32.
    B, S, D = 2, 8, d_model
    key = jax.random.PRNGKey(0)
    x = jax.random.normal(key, (B, S, D), dtype=jnp.float32)
    pe = make_positional_encoding(d_model, max_seq_length, dtype=x.dtype)

    # Pure-JAX reference of the PyTorch forward semantics.
    ref = x + pe[:, :S].astype(jnp.float32)

    fwd = jax.jit(transformer_positional_encoding)
    out = jax.block_until_ready(fwd(x, pe))

    assert out.shape == ref.shape
    assert jnp.allclose(out, ref.astype(out.dtype), atol=1e-6, rtol=1e-6)
    print("KERNEL_OK")
</pallas_src>

<mosaic_0001>
module attributes {stable_mosaic.version = 11 : i64} {
  func.func @_add_pe_kernel(%arg0: i32, %arg1: i32, %arg2: memref<2x128xf32, #tpu.memory_space<vmem>>, %arg3: memref<1x128xf32, #tpu.memory_space<vmem>>, %arg4: memref<2x128xf32, #tpu.memory_space<vmem>>) attributes {dimension_semantics = [#tpu.dimension_semantics<parallel>, #tpu.dimension_semantics<parallel>], iteration_bounds = array<i64: 2, 1>, scalar_prefetch = 0 : i64, scratch_operands = 0 : i64, tpu.core_type = #tpu.core_type<tc>, window_params = [{transform_indices = @transform_0, window_bounds = array<i64: 2, 128>}, {transform_indices = @transform_1, window_bounds = array<i64: 1, 128>}, {transform_indices = @transform_2, window_bounds = array<i64: 2, 128>}]} {
    %c0 = arith.constant 0 : index
    %c0_0 = arith.constant 0 : index
    %0 = vector.load %arg2[%c0, %c0_0] : memref<2x128xf32, #tpu.memory_space<vmem>>, vector<2x128xf32>
    %c0_1 = arith.constant 0 : index
    %c0_2 = arith.constant 0 : index
    %1 = vector.load %arg3[%c0_1, %c0_2] : memref<1x128xf32, #tpu.memory_space<vmem>>, vector<1x128xf32>
    %2 = vector.broadcast %1 : vector<1x128xf32> to vector<2x128xf32>
    %3 = arith.addf %0, %2 : vector<2x128xf32>
    %c0_3 = arith.constant 0 : index
    %c0_4 = arith.constant 0 : index
    %4 = vector.load %arg4[%c0_3, %c0_4] : memref<2x128xf32, #tpu.memory_space<vmem>>, vector<2x128xf32>
    tpu.vector_store %arg4[%c0_3, %c0_4], %3 {strides = array<i32>} : memref<2x128xf32, #tpu.memory_space<vmem>>, vector<2x128xf32>,
    return
  }
  func.func @transform_0(%arg0: i32, %arg1: i32) -> (i32, i32) {
    %c0_i32 = arith.constant 0 : i32
    return %arg1, %arg0 : i32, i32
  }
  func.func @transform_1(%arg0: i32, %arg1: i32) -> (i32, i32) {
    %c0_i32 = arith.constant 0 : i32
    %c0_i32_0 = arith.constant 0 : i32
    return %c0_i32, %arg0 : i32, i32
  }
  func.func @transform_2(%arg0: i32, %arg1: i32) -> (i32, i32) {
    %c0_i32 = arith.constant 0 : i32
    return %arg1, %arg0 : i32, i32
  }
}

</mosaic_0001>

<llo_original>
// kernel: squeeze.1
$region0: #{squeeze.1}
  %s0 = inlined_call_operand.vmem [shape: f32[1,8,32], index: 0, kind: input, shape index: {}]
  %s1 = inlined_call_operand.vmem [shape: f32[1,256], index: 1, kind: output, shape index: {}]
  $region1: #{squeeze.1} parent=0
    #allocation0 [shape = 'u8[8192]{0}', space=vmem, size = 0x2000, scoped, tag = 'scoped mem for output reshape']
    %s2 = smov 3
    %v3 = vld [vmem:[%s0] ss:$4 sm:%s2]
    %vm4 = vcmask 261120
    %5 = vst.msk [vmem:[#allocation0] ss:$8 sm:$0x3] %vm4, %v3
    %s6 = scalar_lea.vmem %s0, 3
    %s7 = smov 3
    %v8 = vld [vmem:[%s6] ss:$4 sm:%s7]
    %9 = vrot.lane.b32.xlu0 %v8, 96
    %v10 = vpop.permute.xlu0 %9
    %vm11 = vcmask 1048320
    %12 = vst.msk [vmem:[#allocation0] ss:$8 sm:$0x3] %vm11, %v10
    %s13 = scalar_lea.vmem %s0, 2
    %s14 = smov 3
    %v15 = vld [vmem:[%s13] ss:$4 sm:%s14]
    %16 = vrot.lane.b32.xlu0 %v15, 64
    %v17 = vpop.permute.xlu0 %16
    %vm18 = vcmask 785920
    %19 = vst.msk [vmem:[#allocation0] ss:$8 sm:$0x3] %vm18, %v17
    %s20 = scalar_lea.vmem %s0, 1
    %s21 = smov 3
    %v22 = vld [vmem:[%s20] ss:$4 sm:%s21]
    %23 = vrot.lane.b32.xlu0 %v22, 32
    %v24 = vpop.permute.xlu0 %23
    %vm25 = vcmask 523520
    %26 = vst.msk [vmem:[#allocation0] ss:$8 sm:$0x3] %vm25, %v24
    %s28 = sshllo.u32 0, 1
    %v30 = vld [vmem:[#allocation0] sm:%s28]
    %s31 = sshllo.u32 0, 1
    %32 = vst [vmem:[%s1] sm:%s31] %v30
    %s33 = scalar_lea.vmem [#allocation0], 8
    %v34 = vld [vmem:[%s33] sm:%s28]
    %s35 = sshllo.u32 0, 1
    %s36 = scalar_lea.vmem %s1, 1
    %37 = vst [vmem:[%s36] sm:%s35] %v34

// kernel: transformer_positional_encoding.1
$region0: #{transformer_positional_encoding.1}
  #allocation0 [shape = 'u32[]', space=smem, size = 0x4, offset = 0x4, fixed_abs, tag = 'smem constant byte address 0x4 - core index']
  #allocation1 [shape = 'u32[144,128]{1,0:T(1,128)}', space=vmem, size = 0x12000, scoped, tag = 'internal scratch']
  %s0 = inlined_call_operand.vmem [shape: f32[2,256], index: 0, kind: input, shape index: {}, may-alias: {0,2}]
  %s1 = inlined_call_operand.vmem [shape: f32[1,256], index: 1, kind: input, shape index: {}]
  %s2 = inlined_call_operand.vmem [shape: f32[2,256], index: 2, kind: output, shape index: {}, may-alias: {0,2}]
  %s3 = sld [smem:[#allocation0]]
  $region41: #{transformer_positional_encoding.1} parent=0
    _
  %s5 = ssub.s32 1, %s3
  %s6 = scalar_select 0, %s5, %s3
  loop: start=0, step=1, limit=4
  $region2: #{transformer_positional_encoding.1} parent=0 // loop_pre_header
    _
  $region3: #{transformer_positional_encoding.1} parent=0 // loop_header
    %s8 = sphi 0, %s12
    %p9 = scmp.ge.s32.totalorder %s8, 4
    %s15 = sphi 0, %s27
    %s16 = sphi 0, %s23
    %s17 = sphi 0, %s15
    %s18 = sphi 0, %s16
    %s19 = sphi 0, %s17
    %s20 = sphi 0, %s18
    %s32 = sphi 0, %s34
    %s35 = sphi 0, %s32
    %s36 = sphi 0, %s35
    %s52 = sphi 0, %s36
    %s58 = sphi 0, %s60
    %s61 = sphi 0, %s58
    %s62 = sphi 0, %s61
    %s78 = sphi 0, %s62
    %s86 = sphi 0, %s88
    %s89 = sphi 0, %s86
    %s90 = sphi 0, %s89
    %s106 = sphi 0, %s90
  $region4: #{transformer_positional_encoding.1} parent=0 // loop_header_branch
    %11 = sbr.rel (%p9) target = $region8
  $region5: #{transformer_positional_encoding.1} parent=0 // loop_body
    %s13 = ssub.s32 %s8, 1
    %s14 = ssub.s32 %s8, 2
    %s21 = sadd.s32 1, %s16
    %p22 = scmp.ge.s32.totalorder %s21, 1
    %s23 = scalar_select %p22, 0, %s21
    %s24 = sadd.s32 1, %s15
    %s25 = scalar_select %p22, %s24, %s15
    %p26 = scmp.ge.s32.totalorder %s25, 2
    %s27 = scalar_select %p26, 0, %s25
    %s28 = ssub.s32 %s16, %s23
    %s29 = ssub.s32 %s15, %s27
    %s30 = sor.u32 %s28, %s29
    %p31 = scmp.eq.s32.totalorder %s30, 0
    %s33 = sadd.s32 %s32, 1
    %s34 = scalar_select %p31, %s32, %s33
    %p37 = pneg %p31
    %p38 = scmp.eq.s32.totalorder %s8, 1
    %p39 = por %p37, %p38
    %p40 = scmp.ne.s32.totalorder %s32, %s35
    %p41 = scmp.eq.s32.totalorder %s8, 0
    %p42 = por %p40, %p41
    %p43 = scmp.ne.s32.totalorder %s32, %s35
    %p44 = scmp.eq.s32.totalorder %s13, 1
    %p45 = por %p43, %p44
    %p46 = scmp.ne.s32.totalorder %s35, %s36
    %p47 = scmp.eq.s32.totalorder %s13, 0
    %p48 = por %p46, %p47
    %p49 = scmp.ne.s32.totalorder %s35, %s36
    %p50 = scmp.eq.s32.totalorder %s14, 1
    %p51 = por %p49, %p50
    %p53 = scmp.ne.s32.totalorder %s36, %s52
    %p54 = scmp.eq.s32.totalorder %s14, 0
    %p55 = por %p53, %p54
    %s56 = ssub.s32 %s15, %s27
    %p57 = scmp.eq.s32.totalorder %s56, 0
    %s59 = sadd.s32 %s58, 1
    %s60 = scalar_select %p57, %s58, %s59
    %p63 = pneg %p57
    %p64 = scmp.eq.s32.totalorder %s8, 1
    %p65 = por %p63, %p64
    %p66 = scmp.ne.s32.totalorder %s58, %s61
    %p67 = scmp.eq.s32.totalorder %s8, 0
    %p68 = por %p66, %p67
    %p69 = scmp.ne.s32.totalorder %s58, %s61
    %p70 = scmp.eq.s32.totalorder %s13, 1
    %p71 = por %p69, %p70
    %p72 = scmp.ne.s32.totalorder %s61, %s62
    %p73 = scmp.eq.s32.totalorder %s13, 0
    %p74 = por %p72, %p73
    %p75 = scmp.ne.s32.totalorder %s61, %s62
    %p76 = scmp.eq.s32.totalorder %s14, 1
    %p77 = por %p75, %p76
    %p79 = scmp.ne.s32.totalorder %s62, %s78
    %p80 = scmp.eq.s32.totalorder %s14, 0
    %p81 = por %p79, %p80
    %s82 = ssub.s32 %s16, %s23
    %s83 = ssub.s32 %s15, %s27
    %s84 = sor.u32 %s82, %s83
    %p85 = scmp.eq.s32.totalorder %s84, 0
    %s87 = sadd.s32 %s86, 1
    %s88 = scalar_select %p85, %s86, %s87
    %p91 = pneg %p85
    %p92 = scmp.eq.s32.totalorder %s8, 1
    %p93 = por %p91, %p92
    %p94 = scmp.ne.s32.totalorder %s86, %s89
    %p95 = scmp.eq.s32.totalorder %s8, 0
    %p96 = por %p94, %p95
    %p97 = scmp.ne.s32.totalorder %s86, %s89
    %p98 = scmp.eq.s32.totalorder %s13, 1
    %p99 = por %p97, %p98
    %p100 = scmp.ne.s32.totalorder %s89, %s90
    %p101 = scmp.eq.s32.totalorder %s13, 0
    %p102 = por %p100, %p101
    %p103 = scmp.ne.s32.totalorder %s89, %s90
    %p104 = scmp.eq.s32.totalorder %s14, 1
    %p105 = por %p103, %p104
    %p107 = scmp.ne.s32.totalorder %s90, %s106
    %p108 = scmp.eq.s32.totalorder %s14, 0
    %p109 = por %p107, %p108
    %p110 = scmp.le.s32.totalorder 1, %s8
    %p111 = scmp.lt.s32.totalorder %s8, 3
    %p112 = pnand %p110, %p111
    %p113 = pneg %p112
    // Predicated region
    $region9: #{transformer_positional_encoding.1} parent=5 // pred_check
      _
    $region10: #{transformer_positional_encoding.1} parent=5 // pred_check_branch
      %115 = sbr.rel (%p112) target = $region12
    $region11: #{transformer_positional_encoding.1} parent=5 // pred_region
      %s116 = ssub.s32 %s8, 1
    $region12: #{transformer_positional_encoding.1} parent=5 // pred_fallthru
      _
    %p117 = scmp.lt.s32.totalorder %s8, 2
    // Predicated region
    $region13: #{transformer_positional_encoding.1} parent=5 // pred_check
      %p118 = pneg %p117
    $region14: #{transformer_positional_encoding.1} parent=5 // pred_check_branch
      %120 = sbr.rel (%p118) target = $region16
    $region15: #{transformer_positional_encoding.1} parent=5 // pred_region
      // Predicated region
      $region17: #{transformer_positional_encoding.1} parent=15 // pred_check
        %p121 = pneg %p42
      $region18: #{transformer_positional_encoding.1} parent=15 // pred_check_branch
        %123 = sbr.rel (%p121) target = $region20
      $region19: #{transformer_positional_encoding.1} parent=15 // pred_region
        %p124 = scmp.lt.s32.totalorder %s16, 0
        %s125 = scalar_select %p124, %s16, 0
        %p126 = scmp.lt.s32.totalorder %s15, 1
        %s127 = scalar_select %p126, %s15, 1
        %s128 = smul.addr %s125, 2
        %s129 = sadd.s32 %s127, %s128
        %s130 = smul.addr %s129, 2
        %s131 = scalar_lea.vmem %s0, %s130
      $region20: #{transformer_positional_encoding.1} parent=15 // pred_fallthru
        _
      // Predicated region
      $region21: #{transformer_positional_encoding.1} parent=15 // pred_check
        %p132 = pneg %p68
      $region22: #{transformer_positional_encoding.1} parent=15 // pred_check_branch
        %134 = sbr.rel (%p132) target = $region24
      $region23: #{transformer_positional_encoding.1} parent=15 // pred_region
        %p135 = scmp.lt.s32.totalorder %s15, 1
        %s136 = scalar_select %p135, %s15, 1
        %s137 = scalar_lea.vmem %s1, %s136
      $region24: #{transformer_positional_encoding.1} parent=15 // pred_fallthru
        _
    $region16: #{transformer_positional_encoding.1} parent=5 // pred_fallthru
      _
    %p138 = scmp.le.s32.totalorder 1, %s8
    %p139 = scmp.lt.s32.totalorder %s8, 3
    %p140 = pnand %p138, %p139
    %p141 = pneg %p140
    // Predicated region
    $region25: #{transformer_positional_encoding.1} parent=5 // pred_check
      _
    $region26: #{transformer_positional_encoding.1} parent=5 // pred_check_branch
      %143 = sbr.rel (%p140) target = $region28
    $region27: #{transformer_positional_encoding.1} parent=5 // pred_region
      %s144 = ssub.s32 %s8, 1
      %p145 = scmp.lt.s32.totalorder %s18, 0
      %s146 = scalar_select %p145, %s18, 0
      %p147 = scmp.lt.s32.totalorder %s17, 1
      %s148 = scalar_select %p147, %s17, 1
      %s149 = smul.addr %s146, 2
      %s150 = sadd.s32 %s148, %s149
      %s151 = smul.addr %s150, 2
      %s152 = scalar_lea.vmem %s0, %s151
      %p153 = pneg %p48
      %p154 = pneg %p45
      %p155 = scmp.lt.s32.totalorder %s17, 1
      %s156 = scalar_select %p155, %s17, 1
      %s157 = scalar_lea.vmem %s1, %s156
      %p158 = pneg %p74
      %p159 = pneg %p71
      %p160 = pneg %p102
      %p161 = pneg %p99
      %p162 = scmp.lt.s32.totalorder %s18, 0
      %s163 = scalar_select %p162, %s18, 0
      %p164 = scmp.lt.s32.totalorder %s17, 1
      %s165 = scalar_select %p164, %s17, 1
      %s166 = smul.addr %s163, 2
      %s167 = sadd.s32 %s165, %s166
      %s168 = smul.addr %s167, 2
      %s169 = scalar_lea.vmem %s2, %s168
      %p170 = scmp.lt.s32.totalorder %s18, 0
      %s171 = scalar_select %p170, %s18, 0
      %p172 = scmp.lt.s32.totalorder %s17, 1
      %s173 = scalar_select %p172, %s17, 1
      %s174 = smul.addr %s171, 2
      %s175 = sadd.s32 %s173, %s174
      %s176 = smul.addr %s175, 2
      %s177 = scalar_lea.vmem %s0, %s176
      %p178 = scmp.lt.s32.totalorder %s17, 1
      %s179 = scalar_select %p178, %s17, 1
      %s180 = scalar_lea.vmem %s1, %s179
      %p181 = scmp.lt.s32.totalorder %s18, 0
      %s182 = scalar_select %p181, %s18, 0
      %p183 = scmp.lt.s32.totalorder %s17, 1
      %s184 = scalar_select %p183, %s17, 1
      %s185 = smul.addr %s182, 2
      %s186 = sadd.s32 %s184, %s185
      %s187 = smul.addr %s186, 2
      %s188 = scalar_lea.vmem %s2, %s187
      %v189 = vld [vmem:[%s177] sm:$0x3]
      %v190 = vld [vmem:[%s180] sm:$0x1]
      %v192 = vlaneseq
      %v193 = vshrl.u32 %v192, 7
      %v194 = vsub.s32 0, %v193
      %v195 = vrot.slane %v190, %v194
      %v197 = vadd.f32 %v189, %v195
      %198 = vst [vmem:[%s188] sm:$0x3] %v197
      %p199 = scmp.lt.s32.totalorder %s18, 0
      %s200 = scalar_select %p199, %s18, 0
      %p201 = scmp.lt.s32.totalorder %s17, 1
      %s202 = scalar_select %p201, %s17, 1
      %s203 = smul.addr %s200, 2
      %s204 = sadd.s32 %s202, %s203
      %s205 = smul.addr %s204, 2
      %s206 = scalar_lea.vmem %s2, %s205
      // Predicated region
      $region29: #{transformer_positional_encoding.1} parent=27 // pred_check
        %p207 = pneg %p99
      $region30: #{transformer_positional_encoding.1} parent=27 // pred_check_branch
        %209 = sbr.rel (%p207) target = $region32
      $region31: #{transformer_positional_encoding.1} parent=27 // pred_region
        _
      $region32: #{transformer_positional_encoding.1} parent=27 // pred_fallthru
        _
    $region28: #{transformer_positional_encoding.1} parent=5 // pred_fallthru
      _
    %p210 = scmp.le.s32.totalorder 2, %s8
    // Predicated region
    $region33: #{transformer_positional_encoding.1} parent=5 // pred_check
      %p211 = pneg %p210
    $region34: #{transformer_positional_encoding.1} parent=5 // pred_check_branch
      %213 = sbr.rel (%p211) target = $region36
    $region35: #{transformer_positional_encoding.1} parent=5 // pred_region
      %s214 = ssub.s32 %s8, 2
      // Predicated region
      $region37: #{transformer_positional_encoding.1} parent=35 // pred_check
        %p215 = pneg %p105
      $region38: #{transformer_positional_encoding.1} parent=35 // pred_check_branch
        %217 = sbr.rel (%p215) target = $region40
      $region39: #{transformer_positional_encoding.1} parent=35 // pred_region
        %p218 = scmp.lt.s32.totalorder %s20, 0
        %s219 = scalar_select %p218, %s20, 0
        %p220 = scmp.lt.s32.totalorder %s19, 1
        %s221 = scalar_select %p220, %s19, 1
        %s222 = smul.addr %s219, 2
        %s223 = sadd.s32 %s221, %s222
        %s224 = smul.addr %s223, 2
        %s225 = scalar_lea.vmem %s2, %s224
      $region40: #{transformer_positional_encoding.1} parent=35 // pred_fallthru
        _
    $region36: #{transformer_positional_encoding.1} parent=5 // pred_fallthru
      _
  $region6: #{transformer_positional_encoding.1} parent=0 // loop_footer
    %s12 = sadd.s32 1, %s8
  $region7: #{transformer_positional_encoding.1} parent=0 // loop_footer_branch
    %7 = sbr.rel target = $region3
  $region8: #{transformer_positional_encoding.1} parent=0 // loop_exit
    _

</llo_original>
